<compile_context>
chip_gen: v6e
topology: v6e:2x2x1
jax: 0.10.0
libtpu: 0.0.40
codegen_flags: <defaults>
</compile_context>

<pallas_src>
import jax
import jax.numpy as jnp
from jax.experimental import pallas as pl
from jax.experimental.pallas import tpu as pltpu


# Packed parameter layout: a single (48, 16) f32 block, sublane-aligned slabs.
#   rows  0:14, cols 0:4   -> W1 (14, 4)    rows  0:14, col 4  -> b1 (14,)
#   rows 16:25, cols 0:14  -> W2 ( 9, 14)   rows 16:25, col 14 -> b2 ( 9,)
#   rows 32:35, cols 0:9   -> W3 ( 3, 9)    rows 32:35, col 9  -> b3 ( 3,)
_P_ROWS, _P_COLS = 48, 16

_MAX_TILE_B = 32768   # lane-tile over the batch; sweep 16384/32768/65536
_MIN_GRID = 8         # keep >=8 steps on big batches (megacore + pipelining)


def _round_up(n, m):
    return ((n + m - 1) // m) * m


def _mlp_kernel(p_ref, x_ref, out_ref):
    # x_ref: (4, TILE_B) feature-major block (batch on the lane axis).
    x = x_ref[...]

    w1 = p_ref[0:14, 0:4]
    b1 = p_ref[0:14, 4:5]
    w2 = p_ref[16:25, 0:14]
    b2 = p_ref[16:25, 14:15]
    w3 = p_ref[32:35, 0:9]
    b3 = p_ref[32:35, 9:10]

    # Layer 1: Linear(4, 14) + ReLU  -> (14, TILE_B)
    h1 = jnp.maximum(jnp.dot(w1, x, preferred_element_type=jnp.float32) + b1, 0.0)
    # Layer 2: Linear(14, 9) + ReLU  -> (9, TILE_B)
    h2 = jnp.maximum(jnp.dot(w2, h1, preferred_element_type=jnp.float32) + b2, 0.0)
    # Layer 3: Linear(9, 3)          -> (3, TILE_B)
    logits = jnp.dot(w3, h2, preferred_element_type=jnp.float32) + b3

    # Numerically stable log_softmax over the 3 classes (feature axis here ==
    # dim=1 of the batch-major PyTorch layout).  Explicit row slices keep the
    # tiny 3-way max/sum on the VPU instead of an XLU sublane reduction.
    l0 = logits[0:1, :]
    l1 = logits[1:2, :]
    l2 = logits[2:3, :]
    m = jnp.maximum(l0, jnp.maximum(l1, l2))
    lse = jnp.log(jnp.exp(l0 - m) + jnp.exp(l1 - m) + jnp.exp(l2 - m)) + m
    out_ref[...] = (logits - lse).astype(out_ref.dtype)


def pack_params(params):
    """One-time packing of PyTorch-layout (out,in) weights + biases into a
    single small block the kernel keeps VMEM-resident across grid steps."""
    p = jnp.zeros((_P_ROWS, _P_COLS), jnp.float32)
    p = p.at[0:14, 0:4].set(params["w1"].astype(jnp.float32))
    p = p.at[0:14, 4].set(params["b1"].astype(jnp.float32))
    p = p.at[16:25, 0:14].set(params["w2"].astype(jnp.float32))
    p = p.at[16:25, 14].set(params["b2"].astype(jnp.float32))
    p = p.at[32:35, 0:9].set(params["w3"].astype(jnp.float32))
    p = p.at[32:35, 9].set(params["b3"].astype(jnp.float32))
    return p


@jax.jit
def net_forward(x, packed):
    """x: (B, 4) float32, packed: pack_params(params). Returns (B, 3) log-probs."""
    B = x.shape[0]

    # Tile selection:
    #  - small batches: one full-extent block (lane dim == full dim is legal).
    #  - large batches: 128-multiple lane tiles, capped by _MAX_TILE_B and
    #    sized so there are >= _MIN_GRID steps (v7x megacore gets >=2 per TC).
    if B <= 1024:
        tile_b = B
    else:
        tile_b = min(_MAX_TILE_B, _round_up(pl.cdiv(B, _MIN_GRID), 128))
    grid = (pl.cdiv(B, tile_b),)

    # Single transpose to the lane-dense feature-major layout.  No zero-fill,
    # no scatter, no batch padding: ragged final blocks are handled by Pallas
    # (OOB input lanes read garbage, OOB output lanes are dropped, and every
    # column's result depends only on its own column).
    x_fm = x.T  # (4, B)

    cost = pl.CostEstimate(
        flops=2 * B * (14 * 4 + 9 * 14 + 3 * 9),
        transcendentals=4 * B,  # 3x exp + 1x log per batch column
        bytes_accessed=B * (4 + 3) * 4 + _P_ROWS * _P_COLS * 4,
    )

    out_fm = pl.pallas_call(
        _mlp_kernel,
        out_shape=jax.ShapeDtypeStruct((3, B), jnp.float32),
        grid=grid,
        in_specs=[
            # Packed params: constant block index -> stays resident in VMEM.
            pl.BlockSpec((_P_ROWS, _P_COLS), lambda i: (0, 0)),
            # Input tile: batch (lane axis) is tiled, features are full.
            pl.BlockSpec((4, tile_b), lambda i: (0, i)),
        ],
        out_specs=pl.BlockSpec((3, tile_b), lambda i: (0, i)),
        compiler_params=pltpu.CompilerParams(
            dimension_semantics=("parallel",),   # shard batch tiles across TCs
            vmem_limit_bytes=48 * 1024 * 1024,   # big tiles need > default scoped VMEM
        ),
        cost_estimate=cost,
    )(packed, x_fm)

    # Back to the PyTorch (B, 3) batch-major convention.
    return out_fm.T


def init_params(key):
    """Deterministic parameter init mimicking PyTorch Linear default
    (uniform in +/-1/sqrt(fan_in)); weights stored in PyTorch (out, in) layout."""
    def linear(key, fan_in, fan_out):
        kw, kb = jax.random.split(key)
        bound = 1.0 / jnp.sqrt(fan_in)
        w = jax.random.uniform(kw, (fan_out, fan_in), jnp.float32, -bound, bound)
        b = jax.random.uniform(kb, (fan_out,), jnp.float32, -bound, bound)
        return w, b

    k1, k2, k3 = jax.random.split(key, 3)
    w1, b1 = linear(k1, 4, 14)
    w2, b2 = linear(k2, 14, 9)
    w3, b3 = linear(k3, 9, 3)
    return {"w1": w1, "b1": b1, "w2": w2, "b2": b2, "w3": w3, "b3": b3}


def _reference(x, p):
    """Pure-JAX reference reproducing the PyTorch forward exactly."""
    h = jax.nn.relu(x @ p["w1"].T + p["b1"])
    h = jax.nn.relu(h @ p["w2"].T + p["b2"])
    logits = h @ p["w3"].T + p["b3"]
    return jax.nn.log_softmax(logits, axis=1)


if __name__ == "__main__":
    key = jax.random.PRNGKey(0)
    kx, kp, kx2 = jax.random.split(key, 3)

    params = init_params(kp)
    packed = pack_params(params)  # hoisted out of the forward pass (done once)

    # Small shape consistent with the module: batch=8, 4 input features.
    B = 8
    x = jax.random.normal(kx, (B, 4), dtype=jnp.float32)
    out = net_forward(x, packed)
    jax.block_until_ready(out)

    ref = _reference(x, params)
    assert out.shape == (B, 3)
    assert jnp.allclose(out, ref, atol=1e-5, rtol=1e-5)

    # Second check exercising multiple grid tiles + a ragged final block
    # (2500 is not a multiple of the 384-column tile chosen for this size).
    B2 = 2500
    x2 = jax.random.normal(kx2, (B2, 4), dtype=jnp.float32)
    out2 = net_forward(x2, packed)
    jax.block_until_ready(out2)
    ref2 = _reference(x2, params)
    assert out2.shape == (B2, 3)
    assert jnp.allclose(out2, ref2, atol=1e-5, rtol=1e-5)

    print("KERNEL_OK")
</pallas_src>

<mosaic_0001>
module attributes {stable_mosaic.version = 11 : i64} {
  func.func @_mlp_kernel(%arg0: i32, %arg1: memref<48x16xf32, #tpu.memory_space<vmem>>, %arg2: memref<4x8xf32, #tpu.memory_space<vmem>>, %arg3: memref<3x8xf32, #tpu.memory_space<vmem>>) attributes {dimension_semantics = [#tpu.dimension_semantics<parallel>], iteration_bounds = array<i64: 1>, scalar_prefetch = 0 : i64, scratch_operands = 0 : i64, tpu.core_type = #tpu.core_type<tc>, window_params = [{pipeline_mode = #tpu.pipeline_mode<synchronous>, transform_indices = @transform_0, window_bounds = array<i64: 48, 16>}, {transform_indices = @transform_1, window_bounds = array<i64: 4, 8>}, {transform_indices = @transform_2, window_bounds = array<i64: 3, 8>}]} {
    %c0 = arith.constant 0 : index
    %c0_0 = arith.constant 0 : index
    %0 = vector.load %arg2[%c0, %c0_0] : memref<4x8xf32, #tpu.memory_space<vmem>>, vector<4x8xf32>
    %c0_1 = arith.constant 0 : index
    %c0_2 = arith.constant 0 : index
    %1 = vector.load %arg1[%c0_1, %c0_2] : memref<48x16xf32, #tpu.memory_space<vmem>>, vector<14x4xf32>
    %c0_3 = arith.constant 0 : index
    %c4 = arith.constant 4 : index
    %2 = vector.load %arg1[%c0_3, %c4] : memref<48x16xf32, #tpu.memory_space<vmem>>, vector<14x1xf32>
    %c16 = arith.constant 16 : index
    %c0_4 = arith.constant 0 : index
    %3 = vector.load %arg1[%c16, %c0_4] : memref<48x16xf32, #tpu.memory_space<vmem>>, vector<9x14xf32>
    %c16_5 = arith.constant 16 : index
    %c14 = arith.constant 14 : index
    %4 = vector.load %arg1[%c16_5, %c14] : memref<48x16xf32, #tpu.memory_space<vmem>>, vector<9x1xf32>
    %c32 = arith.constant 32 : index
    %c0_6 = arith.constant 0 : index
    %5 = vector.load %arg1[%c32, %c0_6] : memref<48x16xf32, #tpu.memory_space<vmem>>, vector<3x9xf32>
    %c32_7 = arith.constant 32 : index
    %c9 = arith.constant 9 : index
    %6 = vector.load %arg1[%c32_7, %c9] : memref<48x16xf32, #tpu.memory_space<vmem>>, vector<3x1xf32>
    %cst = arith.constant dense<0.000000e+00> : vector<14x8xf32>
    %7 = tpu.matmul %1, %0, %cst {dimension_numbers = #tpu.dot_dimension_numbers<[1], [0], [0], [1], [0, 0, 1, 1], [], []>} : vector<14x4xf32>, vector<4x8xf32>, vector<14x8xf32> -> vector<14x8xf32>
    %8 = vector.broadcast %2 : vector<14x1xf32> to vector<14x8xf32>
    %9 = arith.addf %7, %8 : vector<14x8xf32>
    %cst_8 = arith.constant 0.000000e+00 : f32
    %10 = vector.broadcast %cst_8 : f32 to vector<14x8xf32>
    %11 = arith.maximumf %9, %10 : vector<14x8xf32>
    %cst_9 = arith.constant dense<0.000000e+00> : vector<9x8xf32>
    %12 = tpu.matmul %3, %11, %cst_9 {dimension_numbers = #tpu.dot_dimension_numbers<[1], [0], [0], [1], [0, 0, 1, 1], [], []>} : vector<9x14xf32>, vector<14x8xf32>, vector<9x8xf32> -> vector<9x8xf32>
    %13 = vector.broadcast %4 : vector<9x1xf32> to vector<9x8xf32>
    %14 = arith.addf %12, %13 : vector<9x8xf32>
    %cst_10 = arith.constant 0.000000e+00 : f32
    %15 = vector.broadcast %cst_10 : f32 to vector<9x8xf32>
    %16 = arith.maximumf %14, %15 : vector<9x8xf32>
    %cst_11 = arith.constant dense<0.000000e+00> : vector<3x8xf32>
    %17 = tpu.matmul %5, %16, %cst_11 {dimension_numbers = #tpu.dot_dimension_numbers<[1], [0], [0], [1], [0, 0, 1, 1], [], []>} : vector<3x9xf32>, vector<9x8xf32>, vector<3x8xf32> -> vector<3x8xf32>
    %18 = vector.broadcast %6 : vector<3x1xf32> to vector<3x8xf32>
    %19 = arith.addf %17, %18 : vector<3x8xf32>
    %20 = vector.extract_strided_slice %19 {offsets = [0, 0], sizes = [1, 8], strides = [1, 1]} : vector<3x8xf32> to vector<1x8xf32>
    %21 = vector.extract_strided_slice %19 {offsets = [1, 0], sizes = [1, 8], strides = [1, 1]} : vector<3x8xf32> to vector<1x8xf32>
    %22 = vector.extract_strided_slice %19 {offsets = [2, 0], sizes = [1, 8], strides = [1, 1]} : vector<3x8xf32> to vector<1x8xf32>
    %23 = arith.maximumf %21, %22 : vector<1x8xf32>
    %24 = arith.maximumf %20, %23 : vector<1x8xf32>
    %25 = arith.subf %20, %24 : vector<1x8xf32>
    %26 = math.exp %25 : vector<1x8xf32>
    %27 = arith.subf %21, %24 : vector<1x8xf32>
    %28 = math.exp %27 : vector<1x8xf32>
    %29 = arith.addf %26, %28 : vector<1x8xf32>
    %30 = arith.subf %22, %24 : vector<1x8xf32>
    %31 = math.exp %30 : vector<1x8xf32>
    %32 = arith.addf %29, %31 : vector<1x8xf32>
    %33 = math.log %32 : vector<1x8xf32>
    %34 = arith.addf %33, %24 : vector<1x8xf32>
    %35 = vector.broadcast %34 : vector<1x8xf32> to vector<3x8xf32>
    %36 = arith.subf %19, %35 : vector<3x8xf32>
    %c0_12 = arith.constant 0 : index
    %c0_13 = arith.constant 0 : index
    %37 = vector.load %arg3[%c0_12, %c0_13] : memref<3x8xf32, #tpu.memory_space<vmem>>, vector<3x8xf32>
    tpu.vector_store %arg3[%c0_12, %c0_13], %36 {strides = array<i32>} : memref<3x8xf32, #tpu.memory_space<vmem>>, vector<3x8xf32>,
    return
  }
  func.func @transform_0(%arg0: i32) -> (i32, i32) {
    %c0_i32 = arith.constant 0 : i32
    %c0_i32_0 = arith.constant 0 : i32
    %c0_i32_1 = arith.constant 0 : i32
    return %c0_i32, %c0_i32_0 : i32, i32
  }
  func.func @transform_1(%arg0: i32) -> (i32, i32) {
    %c0_i32 = arith.constant 0 : i32
    %c0_i32_0 = arith.constant 0 : i32
    return %c0_i32, %arg0 : i32, i32
  }
  func.func @transform_2(%arg0: i32) -> (i32, i32) {
    %c0_i32 = arith.constant 0 : i32
    %c0_i32_0 = arith.constant 0 : i32
    return %c0_i32, %arg0 : i32, i32
  }
}

</mosaic_0001>

<llo_original>
// kernel: net_forward.1
$region0: #{net_forward.1}
  #allocation0 [shape = 'u32[]', space=smem, size = 0x4, offset = 0x4, fixed_abs, tag = 'smem constant byte address 0x4 - core index']
  #allocation1 [shape = 'u32[144,128]{1,0:T(1,128)}', space=vmem, size = 0x12000, scoped, tag = 'internal scratch']
  %s0 = inlined_call_operand.vmem [shape: f32[48,16], index: 0, kind: input, shape index: {}]
  %s1 = inlined_call_operand.vmem [shape: f32[4,8], index: 1, kind: input, shape index: {}]
  %s2 = inlined_call_operand.hbm [shape: f32[3,8], index: 2, kind: output, shape index: {}]
  %s3 = sld [smem:[#allocation0]]
  $region18: #{net_forward.1} parent=0
    _
  %s5 = ssub.s32 1, %s3
  %s6 = scalar_select 0, %s5, %s3
  $region1: #{net_forward.1} parent=0
    #allocation2 [shape = 'u8[2048]{0}', space=vmem, size = 0x800, scoped, tag = 'output window, operand 0, single buffered']
    #allocation3 [shape = 's32[1]{0}', space=sflag, size = 0x4, scoped, tag = 'scoped memory for net_forward.1']
    %7 = vsyncpa [#allocation3], 0
    // Predicated region
    $region2: #{net_forward.1} parent=1 // pred_check
      _
    $region3: #{net_forward.1} parent=1 // pred_check_branch
      %9 = sbr.rel (0) target = $region5
    $region4: #{net_forward.1} parent=1 // pred_region
      _
    $region5: #{net_forward.1} parent=1 // pred_fallthru
      _
    // Predicated region
    $region6: #{net_forward.1} parent=1 // pred_check
      _
    $region7: #{net_forward.1} parent=1 // pred_check_branch
      %11 = sbr.rel (0) target = $region9
    $region8: #{net_forward.1} parent=1 // pred_region
      _
    $region9: #{net_forward.1} parent=1 // pred_fallthru
      _
    %v12 = vld [vmem:[%s1] sm:$0xf]
    %v13 = vld [vmem:[%s0] sm:$0xff]
    %v14 = vld [vmem:[%s0 + $0x8] sm:$0x3f]
    %v15 = vld [vmem:[%s0 + $0x10] sm:$0xff]
    %v16 = vld [vmem:[%s0 + $0x18] sm:$0x1]
    %v17 = vld [vmem:[%s0 + $0x20] sm:$0x7]
    %19 = vset.pattern.permute.xlu0 4
    %20 = vperm.xlu0 %19, %v13
    %v21 = vpop.permute.xlu0 %20
    %24 = vset.pattern.permute.xlu0 4
    %25 = vperm.xlu0 %24, %v14
    %v26 = vpop.permute.xlu0 %25
    %vm28 = vcmask 31744
    %v29 = vsel %vm28, %v13, 0
    %v31 = vsel %vm28, %v14, 0
    %vm33 = vcmask 1043456
    %v35 = vsel %vm33, %v12, 0
    %37 = vmatprep.subr.mxu0 0.0
    %38 = vmatpush1.msra.mxu0 0.0
    %39 = vmatprep.subr.mxu0 0.0
    %40 = vmatpush1.msra.mxu0 0.0
    %41 = vmatprep.subr.mxu0 0.0
    %42 = vmatpush1.msra.mxu0 0.0
    %43 = vmatprep.subr.mxu0 0.0
    %44 = vmatpush1.msra.mxu0 0.0
    %45 = vmatprep.subr.mxu0 0.0
    %46 = vmatpush1.msra.mxu0 0.0
    %47 = vmatprep.subr.mxu0 0.0
    %48 = vmatpush1.msra.mxu0 0.0
    %49 = vmatprep.subr.mxu0 0.0
    %50 = vmatpush1.msra.mxu0 0.0
    %51 = vmatprep.subr.mxu0 0.0
    %52 = vmatpush1.msra.mxu0 0.0
    %53 = vmatprep.subr.mxu0 0.0
    %54 = vmatpush1.msra.mxu0 0.0
    %55 = vmatprep.subr.mxu0 0.0
    %56 = vmatpush1.msra.mxu0 0.0
    %57 = vmatprep.subr.mxu0 0.0
    %58 = vmatpush1.msra.mxu0 0.0
    %59 = vmatprep.subr.mxu0 0.0
    %60 = vmatpush1.msra.mxu0 0.0
    %61 = vmatprep.subr.mxu0 0.0
    %62 = vmatpush1.msra.mxu0 0.0
    %63 = vmatprep.subr.mxu0 0.0
    %64 = vmatpush1.msra.mxu0 0.0
    %65 = vmatprep.subr.mxu0 0.0
    %66 = vmatpush1.msra.mxu0 0.0
    %67 = vmatprep.subr.mxu0 0.0
    %68 = vmatpush1.msra.mxu0 %v35
    %69 = vmatprep.subr.mxu0 0.0
    %70 = vmatpush2.msra.mxu0 0.0
    %71 = vmatprep.subr.mxu0 0.0
    %72 = vmatpush2.msra.mxu0 0.0
    %73 = vmatprep.subr.mxu0 0.0
    %74 = vmatpush2.msra.mxu0 0.0
    %75 = vmatprep.subr.mxu0 0.0
    %76 = vmatpush2.msra.mxu0 0.0
    %77 = vmatprep.subr.mxu0 0.0
    %78 = vmatpush2.msra.mxu0 0.0
    %79 = vmatprep.subr.mxu0 0.0
    %80 = vmatpush2.msra.mxu0 0.0
    %81 = vmatprep.subr.mxu0 0.0
    %82 = vmatpush2.msra.mxu0 0.0
    %83 = vmatprep.subr.mxu0 0.0
    %84 = vmatpush2.msra.mxu0 0.0
    %85 = vmatprep.subr.mxu0 0.0
    %86 = vmatpush2.msra.mxu0 0.0
    %87 = vmatprep.subr.mxu0 0.0
    %88 = vmatpush2.msra.mxu0 0.0
    %89 = vmatprep.subr.mxu0 0.0
    %90 = vmatpush2.msra.mxu0 0.0
    %91 = vmatprep.subr.mxu0 0.0
    %92 = vmatpush2.msra.mxu0 0.0
    %93 = vmatprep.subr.mxu0 0.0
    %94 = vmatpush2.msra.mxu0 0.0
    %95 = vmatprep.subr.mxu0 0.0
    %96 = vmatpush2.msra.mxu0 0.0
    %97 = vmatprep.subr.mxu0 0.0
    %98 = vmatpush2.msra.mxu0 0.0
    %99 = vmatprep.subr.mxu0 0.0
    %100 = vmatpush2.msra.mxu0 0.0
    %101 = vmatprep.mubr.f32.mxu0 0.0
    %102 = vmatmul.mubr.f32.gmra.mxu0 %v29
    %v103 = vpop.f32.mrf.mxu0
    %v104 = vadd.f32 %v21, %v103
    %v105 = vpop.f32.mrf.mxu0
    %106 = vmatprep.mubr.f32.mxu0 0.0
    %107 = vmatmul.mubr.f32.gmra.mxu0 %v31
    %v108 = vpop.f32.mrf.mxu0
    %v109 = vadd.f32 %v26, %v108
    %v110 = vpop.f32.mrf.mxu0
    %111 = vdwg.mxu0
    %v112 = vmax.f32 %v104, 0.0
    %v113 = vmax.f32 %v109, 0.0
    %115 = vset.pattern.permute.xlu0 14
    %116 = vperm.xlu0 %115, %v15
    %v117 = vpop.permute.xlu0 %116
    %120 = vset.pattern.permute.xlu0 14
    %121 = vperm.xlu0 %120, %v16
    %v122 = vpop.permute.xlu0 %121
    %vm124 = vcmask 113664
    %v125 = vsel %vm124, %v15, 0
    %v127 = vsel %vm124, %v16, 0
    %vm129 = vcmask 1045504
    %v131 = vsel %vm129, %v113, 0
    %133 = vmatprep.subr.mxu0 0.0
    %134 = vmatpush1.msra.mxu0 0.0
    %135 = vmatprep.subr.mxu0 0.0
    %136 = vmatpush1.msra.mxu0 0.0
    %137 = vmatprep.subr.mxu0 0.0
    %138 = vmatpush1.msra.mxu0 0.0
    %139 = vmatprep.subr.mxu0 0.0
    %140 = vmatpush1.msra.mxu0 0.0
    %141 = vmatprep.subr.mxu0 0.0
    %142 = vmatpush1.msra.mxu0 0.0
    %143 = vmatprep.subr.mxu0 0.0
    %144 = vmatpush1.msra.mxu0 0.0
    %145 = vmatprep.subr.mxu0 0.0
    %146 = vmatpush1.msra.mxu0 0.0
    %147 = vmatprep.subr.mxu0 0.0
    %148 = vmatpush1.msra.mxu0 0.0
    %149 = vmatprep.subr.mxu0 0.0
    %150 = vmatpush1.msra.mxu0 0.0
    %151 = vmatprep.subr.mxu0 0.0
    %152 = vmatpush1.msra.mxu0 0.0
    %153 = vmatprep.subr.mxu0 0.0
    %154 = vmatpush1.msra.mxu0 0.0
    %155 = vmatprep.subr.mxu0 0.0
    %156 = vmatpush1.msra.mxu0 0.0
    %157 = vmatprep.subr.mxu0 0.0
    %158 = vmatpush1.msra.mxu0 0.0
    %159 = vmatprep.subr.mxu0 0.0
    %160 = vmatpush1.msra.mxu0 0.0
    %161 = vmatprep.subr.mxu0 0.0
    %162 = vmatpush1.msra.mxu0 %v131
    %163 = vmatprep.subr.mxu0 0.0
    %164 = vmatpush1.msra.mxu0 %v112
    %165 = vmatprep.subr.mxu0 0.0
    %166 = vmatpush2.msra.mxu0 0.0
    %167 = vmatprep.subr.mxu0 0.0
    %168 = vmatpush2.msra.mxu0 0.0
    %169 = vmatprep.subr.mxu0 0.0
    %170 = vmatpush2.msra.mxu0 0.0
    %171 = vmatprep.subr.mxu0 0.0
    %172 = vmatpush2.msra.mxu0 0.0
    %173 = vmatprep.subr.mxu0 0.0
    %174 = vmatpush2.msra.mxu0 0.0
    %175 = vmatprep.subr.mxu0 0.0
    %176 = vmatpush2.msra.mxu0 0.0
    %177 = vmatprep.subr.mxu0 0.0
    %178 = vmatpush2.msra.mxu0 0.0
    %179 = vmatprep.subr.mxu0 0.0
    %180 = vmatpush2.msra.mxu0 0.0
    %181 = vmatprep.subr.mxu0 0.0
    %182 = vmatpush2.msra.mxu0 0.0
    %183 = vmatprep.subr.mxu0 0.0
    %184 = vmatpush2.msra.mxu0 0.0
    %185 = vmatprep.subr.mxu0 0.0
    %186 = vmatpush2.msra.mxu0 0.0
    %187 = vmatprep.subr.mxu0 0.0
    %188 = vmatpush2.msra.mxu0 0.0
    %189 = vmatprep.subr.mxu0 0.0
    %190 = vmatpush2.msra.mxu0 0.0
    %191 = vmatprep.subr.mxu0 0.0
    %192 = vmatpush2.msra.mxu0 0.0
    %193 = vmatprep.subr.mxu0 0.0
    %194 = vmatpush2.msra.mxu0 0.0
    %195 = vmatprep.subr.mxu0 0.0
    %196 = vmatpush2.msra.mxu0 0.0
    %197 = vmatprep.mubr.f32.mxu0 0.0
    %198 = vmatmul.mubr.f32.gmra.mxu0 %v125
    %v199 = vpop.f32.mrf.mxu0
    %v200 = vadd.f32 %v117, %v199
    %v201 = vpop.f32.mrf.mxu0
    %202 = vmatprep.mubr.f32.mxu0 0.0
    %203 = vmatmul.mubr.f32.gmra.mxu0 %v127
    %v204 = vpop.f32.mrf.mxu0
    %v205 = vadd.f32 %v122, %v204
    %v206 = vpop.f32.mrf.mxu0
    %207 = vdwg.mxu0
    %v208 = vmax.f32 %v200, 0.0
    %v209 = vmax.f32 %v205, 0.0
    %211 = vset.pattern.permute.xlu0 9
    %212 = vperm.xlu0 %211, %v17
    %v213 = vpop.permute.xlu0 %212
    %vm215 = vcmask 72704
    %v216 = vsel %vm215, %v17, 0
    %vm218 = vcmask 1040384
    %v220 = vsel %vm218, %v209, 0
    %222 = vmatprep.subr.mxu0 0.0
    %223 = vmatpush1.msra.mxu0 0.0
    %224 = vmatprep.subr.mxu0 0.0
    %225 = vmatpush1.msra.mxu0 0.0
    %226 = vmatprep.subr.mxu0 0.0
    %227 = vmatpush1.msra.mxu0 0.0
    %228 = vmatprep.subr.mxu0 0.0
    %229 = vmatpush1.msra.mxu0 0.0
    %230 = vmatprep.subr.mxu0 0.0
    %231 = vmatpush1.msra.mxu0 0.0
    %232 = vmatprep.subr.mxu0 0.0
    %233 = vmatpush1.msra.mxu0 0.0
    %234 = vmatprep.subr.mxu0 0.0
    %235 = vmatpush1.msra.mxu0 0.0
    %236 = vmatprep.subr.mxu0 0.0
    %237 = vmatpush1.msra.mxu0 0.0
    %238 = vmatprep.subr.mxu0 0.0
    %239 = vmatpush1.msra.mxu0 0.0
    %240 = vmatprep.subr.mxu0 0.0
    %241 = vmatpush1.msra.mxu0 0.0
    %242 = vmatprep.subr.mxu0 0.0
    %243 = vmatpush1.msra.mxu0 0.0
    %244 = vmatprep.subr.mxu0 0.0
    %245 = vmatpush1.msra.mxu0 0.0
    %246 = vmatprep.subr.mxu0 0.0
    %247 = vmatpush1.msra.mxu0 0.0
    %248 = vmatprep.subr.mxu0 0.0
    %249 = vmatpush1.msra.mxu0 0.0
    %250 = vmatprep.subr.mxu0 0.0
    %251 = vmatpush1.msra.mxu0 %v220
    %252 = vmatprep.subr.mxu0 0.0
    %253 = vmatpush1.msra.mxu0 %v208
    %254 = vmatprep.subr.mxu0 0.0
    %255 = vmatpush2.msra.mxu0 0.0
    %256 = vmatprep.subr.mxu0 0.0
    %257 = vmatpush2.msra.mxu0 0.0
    %258 = vmatprep.subr.mxu0 0.0
    %259 = vmatpush2.msra.mxu0 0.0
    %260 = vmatprep.subr.mxu0 0.0
    %261 = vmatpush2.msra.mxu0 0.0
    %262 = vmatprep.subr.mxu0 0.0
    %263 = vmatpush2.msra.mxu0 0.0
    %264 = vmatprep.subr.mxu0 0.0
    %265 = vmatpush2.msra.mxu0 0.0
    %266 = vmatprep.subr.mxu0 0.0
    %267 = vmatpush2.msra.mxu0 0.0
    %268 = vmatprep.subr.mxu0 0.0
    %269 = vmatpush2.msra.mxu0 0.0
    %270 = vmatprep.subr.mxu0 0.0
    %271 = vmatpush2.msra.mxu0 0.0
    %272 = vmatprep.subr.mxu0 0.0
    %273 = vmatpush2.msra.mxu0 0.0
    %274 = vmatprep.subr.mxu0 0.0
    %275 = vmatpush2.msra.mxu0 0.0
    %276 = vmatprep.subr.mxu0 0.0
    %277 = vmatpush2.msra.mxu0 0.0
    %278 = vmatprep.subr.mxu0 0.0
    %279 = vmatpush2.msra.mxu0 0.0
    %280 = vmatprep.subr.mxu0 0.0
    %281 = vmatpush2.msra.mxu0 0.0
    %282 = vmatprep.subr.mxu0 0.0
    %283 = vmatpush2.msra.mxu0 0.0
    %284 = vmatprep.subr.mxu0 0.0
    %285 = vmatpush2.msra.mxu0 0.0
    %286 = vmatprep.mubr.f32.mxu0 0.0
    %287 = vmatmul.mubr.f32.gmra.mxu0 %v216
    %v288 = vpop.f32.mrf.mxu0
    %v289 = vadd.f32 %v213, %v288
    %v290 = vpop.f32.mrf.mxu0
    %291 = vdwg.mxu0
    %v293 = vrot.slane %v289, 1
    %v295 = vmax.f32 %v289, %v293
    %v297 = vrot.slane %v295, 1
    %v299 = vmax.f32 %v289, %v297
    %v300 = vsub.f32 %v289, %v299
    %v301 = vmul.f32 %v300, 1.442695
    %v302 = vpow.pop %v301
    %v304 = vrot.slane %v299, 7
    %v306 = vsub.f32 %v289, %v304
    %v307 = vmul.f32 %v306, 1.442695
    %v308 = vpow.pop %v307
    %v310 = vrot.slane %v308, 1
    %v312 = vadd.f32 %v302, %v310
    %v313 = vrot.slane %v299, 6
    %v315 = vsub.f32 %v289, %v313
    %v316 = vmul.f32 %v315, 1.442695
    %v317 = vpow.pop %v316
    %v319 = vrot.slane %v317, 2
    %v321 = vadd.f32 %v312, %v319
    %v322 = vlog2.pop %v321
    %v323 = vmul.f32 %v322, 0.6931472
    %v324 = vadd.f32 %v323, %v299
    %v325 = vlaneseq
    %v326 = vshrl.u32 %v325, 7
    %v327 = vsub.s32 0, %v326
    %v328 = vrot.slane %v324, %v327
    %v329 = vsub.f32 %v289, %v328
    %vm330 = vcmask 59392
    %331 = vst.msk [vmem:[#allocation2] sm:$0x7] %vm330, %v329
    // Predicated region
    $region10: #{net_forward.1} parent=1 // pred_check
      _
    $region11: #{net_forward.1} parent=1 // pred_check_branch
      %333 = sbr.rel (0) target = $region13
    $region12: #{net_forward.1} parent=1 // pred_region
      %s335 = ssub.s32 64, 64
      %336 = vsyncadd [#allocation3], %s335
      %s338 = sshll.u32 [#allocation2], 4
      %s339 = int_to_ptr.vmem [resolvable:$true] %s338
      %341 = dma.vmem_to_hbm [thread:$0]  %s339, 64, %s2, [#allocation3]
    $region13: #{net_forward.1} parent=1 // pred_fallthru
      _
    // Predicated region
    $region14: #{net_forward.1} parent=1 // pred_check
      _
    $region15: #{net_forward.1} parent=1 // pred_check_branch
      %343 = sbr.rel (0) target = $region17
    $region16: #{net_forward.1} parent=1 // pred_region
      %344 = dma.done [#allocation3], 64
    $region17: #{net_forward.1} parent=1 // pred_fallthru
      _
    %345 = vsyncpa [#allocation3], 1

</llo_original>
